<compile_context>
chip_gen: v7x
topology: tpu7x:2x2x1
jax: 0.10.0
libtpu: 0.0.40
codegen_flags: <defaults>
</compile_context>

<pallas_src>
import functools

import jax
import jax.numpy as jnp
from jax.experimental import pallas as pl
from jax.experimental.pallas import tpu as pltpu

ALPHA = 0.5
BETA = 0.5
GAMMA = 2
LANE = 128


def _round_up(x, m):
    return (x + m - 1) // m * m


def _default_num_partials():
    # 2 TensorCores only on v7x; v5e/v6e are single-TC -> avoid overhang steps.
    try:
        kind = jax.devices()[0].device_kind.lower()
    except Exception:
        return 1
    return 2 if "v7" in kind else 1


def _focal_tversky_partial_kernel(x_ref, t_ref, out_ref, *,
                                  block_rows, blocks_per_part, n_blocks,
                                  n_rows, num_partials):
    p_idx = pl.program_id(0)   # partial / TensorCore-shard index ("parallel")
    j = pl.program_id(1)       # row-block sweep (reduction axis, "arbitrary")

    @pl.when(j == 0)
    def _():
        out_ref[...] = jnp.zeros_like(out_ref)

    def fold(v):
        # (block_rows, LANE) -> (8, LANE): elementwise vreg adds (VPU only; no
        # per-step cross-lane XLU reduction).
        return v.reshape(block_rows // 8, 8, LANE).sum(axis=0)

    def accumulate(p, t):
        # Only three sums needed: TP = sum(p*t), FP = sum(p)-TP, FN = sum(t)-TP.
        out_ref[0, 0] += fold(p * t)
        out_ref[0, 1] += fold(p)
        out_ref[0, 2] += fold(t)

    def fast_path():
        x = x_ref[...].astype(jnp.float32)     # cast from native dtype in VMEM
        t = t_ref[...].astype(jnp.float32)
        accumulate(jax.nn.sigmoid(x), t)       # EUP sigmoid

    def masked_path():
        # Only the (static) last real block ever takes this path.
        row0 = (n_blocks - 1) * block_rows
        row_ids = row0 + jax.lax.broadcasted_iota(
            jnp.int32, (block_rows, LANE), 0)
        valid = row_ids < n_rows
        x = x_ref[...].astype(jnp.float32)
        t = t_ref[...].astype(jnp.float32)
        # NOTE: must stay a true select (jnp.where): the un-DMA'd overhang rows
        # may hold garbage and multiplying by a 0/1 mask would propagate NaNs.
        p = jnp.where(valid, jax.nn.sigmoid(x), 0.0)
        tt = jnp.where(valid, t, 0.0)
        accumulate(p, tt)

    has_ragged_block = (n_rows % block_rows) != 0
    has_overhang = (num_partials * blocks_per_part) != n_blocks

    if not has_ragged_block and not has_overhang:
        # Even split: every grid step is a full, valid block. No masks at all.
        fast_path()
        return

    if has_ragged_block and n_blocks == 1:
        # Single (ragged) block; overhang impossible (num_partials <= n_blocks).
        masked_path()
        return

    logical_block = p_idx * blocks_per_part + j
    in_range = (logical_block < n_blocks) if has_overhang else None

    if has_ragged_block:
        is_tail = logical_block == (n_blocks - 1)
        interior = jnp.logical_not(is_tail)
        if in_range is not None:
            interior = jnp.logical_and(in_range, interior)
        pl.when(interior)(fast_path)   # steady state: unmasked
        pl.when(is_tail)(masked_path)  # one block per run: masked
    else:
        # Only overhang to guard against: skip compute entirely for clamped
        # re-read steps.
        pl.when(in_range)(fast_path)


def focal_tversky_loss(inputs, targets, smooth=1.0, alpha=ALPHA, beta=BETA,
                       gamma=GAMMA, block_rows=4096, num_partials=None):
    """Pallas implementation of FocalTverskyLoss.forward. Returns f32 scalar."""
    x = inputs.reshape(-1)     # keep native dtypes (bf16 logits / int8 masks OK)
    t = targets.reshape(-1)
    n = x.shape[0]

    full_rows = n // LANE
    rem = n % LANE

    # Ragged (<128 element) lane tail: tiny XLA epilogue instead of a padded
    # HBM copy of both inputs.
    tail_tp = jnp.float32(0.0)
    tail_p = jnp.float32(0.0)
    tail_t = jnp.float32(0.0)
    if rem:
        x_tail = x[full_rows * LANE:].astype(jnp.float32)
        t_tail = t[full_rows * LANE:].astype(jnp.float32)
        p_tail = jax.nn.sigmoid(x_tail)
        tail_tp = jnp.sum(p_tail * t_tail)
        tail_p = jnp.sum(p_tail)
        tail_t = jnp.sum(t_tail)

    if full_rows == 0:
        tp = tail_tp
        sum_p = tail_p
        sum_t = tail_t
    else:
        # Lane-aligned (rows, 128) slab; zero-copy reshape when rem == 0.
        x2 = x[:full_rows * LANE].reshape(full_rows, LANE)
        t2 = t[:full_rows * LANE].reshape(full_rows, LANE)
        n_rows = full_rows

        # Sublane multiple required by the narrowest input dtype
        # (f32:8, bf16:16, i8/bool:32); also keeps block_rows % 8 == 0.
        mult = max(8 * (4 // max(1, x2.dtype.itemsize)),
                   8 * (4 // max(1, t2.dtype.itemsize)), 8)
        block_rows = max(mult, _round_up(int(block_rows), mult))
        block_rows = min(block_rows, _round_up(n_rows, mult))

        n_blocks = pl.cdiv(n_rows, block_rows)
        if num_partials is None:
            num_partials = _default_num_partials()
        num_partials = max(1, min(int(num_partials), n_blocks))
        blocks_per_part = pl.cdiv(n_blocks, num_partials)

        kernel = functools.partial(
            _focal_tversky_partial_kernel,
            block_rows=block_rows, blocks_per_part=blocks_per_part,
            n_blocks=n_blocks, n_rows=n_rows, num_partials=num_partials)

        def in_map(p, j):
            # Clamp so overhang grid steps never DMA out of bounds (their
            # compute is skipped in the kernel).
            return (jnp.minimum(p * blocks_per_part + j, n_blocks - 1), 0)

        n_main = n_rows * LANE
        cost = pl.CostEstimate(
            flops=5 * n_main,
            transcendentals=n_main,
            bytes_accessed=int(x2.size) * x2.dtype.itemsize
            + int(t2.size) * t2.dtype.itemsize
            + num_partials * 3 * 8 * LANE * 4)

        partials = pl.pallas_call(
            kernel,
            out_shape=jax.ShapeDtypeStruct((num_partials, 3, 8, LANE),
                                           jnp.float32),
            grid_spec=pltpu.PrefetchScalarGridSpec(
                num_scalar_prefetch=0,
                grid=(num_partials, blocks_per_part),
                in_specs=[
                    pl.BlockSpec((block_rows, LANE), in_map),
                    pl.BlockSpec((block_rows, LANE), in_map),
                ],
                out_specs=pl.BlockSpec((1, 3, 8, LANE),
                                       lambda p, j: (p, 0, 0, 0)),
            ),
            compiler_params=pltpu.CompilerParams(
                dimension_semantics=("parallel", "arbitrary"),
                vmem_limit_bytes=32 * 1024 * 1024),
            cost_estimate=cost,
        )(x2, t2)

        # Tiny epilogue: combine (P,3,8,128) partials + ragged tail + focal term.
        sums = jnp.sum(partials, axis=(0, 2, 3))   # (3,) = [sum_pt, sum_p, sum_t]
        tp = sums[0] + tail_tp
        sum_p = sums[1] + tail_p
        sum_t = sums[2] + tail_t

    fp = sum_p - tp
    fn = sum_t - tp
    tversky = (tp + smooth) / (tp + alpha * fp + beta * fn + smooth)
    return (1.0 - tversky) ** gamma


def _reference(inputs, targets, smooth=1.0, alpha=ALPHA, beta=BETA, gamma=GAMMA):
    p = jax.nn.sigmoid(inputs.reshape(-1).astype(jnp.float32))
    t = targets.reshape(-1).astype(jnp.float32)
    tp = jnp.sum(p * t)
    fp = jnp.sum((1 - t) * p)
    fn = jnp.sum(t * (1 - p))
    tversky = (tp + smooth) / (tp + alpha * fp + beta * fn + smooth)
    return (1 - tversky) ** gamma


if __name__ == "__main__":
    key = jax.random.PRNGKey(0)

    # Main test: segmentation-logits / binary-mask pair, lane-aligned size.
    k1, k2, k3, k4, k5, k6 = jax.random.split(key, 6)
    x = jax.random.normal(k1, (2, 4, 16, 16), dtype=jnp.float32)
    y = (jax.random.uniform(k2, (2, 4, 16, 16)) > 0.5).astype(jnp.float32)
    loss = jax.block_until_ready(focal_tversky_loss(x, y))
    ref = _reference(x, y)
    assert jnp.allclose(loss, ref, atol=1e-5, rtol=1e-5), (loss, ref)

    # Ragged test: exercises the masked-tail block (explicit small block_rows)
    # and the <128-element XLA lane-tail epilogue.
    xr = jax.random.normal(k3, (2, 3, 50, 5), dtype=jnp.float32)   # 1500 elems
    yr = (jax.random.uniform(k4, (2, 3, 50, 5)) > 0.5).astype(jnp.float32)
    loss_r = jax.block_until_ready(focal_tversky_loss(xr, yr, block_rows=8))
    ref_r = _reference(xr, yr)
    assert jnp.allclose(loss_r, ref_r, atol=1e-5, rtol=1e-5), (loss_r, ref_r)

    # Tiny (<128 elements) test: pure-epilogue path, no kernel launch.
    xt = jax.random.normal(k5, (3, 5, 7), dtype=jnp.float32)       # 105 elems
    yt = (jax.random.uniform(k6, (3, 5, 7)) > 0.5).astype(jnp.float32)
    loss_t = jax.block_until_ready(focal_tversky_loss(xt, yt))
    ref_t = _reference(xt, yt)
    assert jnp.allclose(loss_t, ref_t, atol=1e-5, rtol=1e-5), (loss_t, ref_t)

    print("KERNEL_OK")
</pallas_src>

<mosaic_0001>
module attributes {stable_mosaic.version = 11 : i64} {
  func.func @_focal_tversky_partial_kernel(%arg0: i32, %arg1: i32, %arg2: memref<16x128xf32, #tpu.memory_space<vmem>>, %arg3: memref<16x128xf32, #tpu.memory_space<vmem>>, %arg4: memref<1x3x8x128xf32, #tpu.memory_space<vmem>>) attributes {dimension_semantics = [#tpu.dimension_semantics<parallel>, #tpu.dimension_semantics<arbitrary>], iteration_bounds = array<i64: 1, 1>, scalar_prefetch = 0 : i64, scratch_operands = 0 : i64, tpu.core_type = #tpu.core_type<tc>, window_params = [{transform_indices = @transform_0, window_bounds = array<i64: 16, 128>}, {transform_indices = @transform_1, window_bounds = array<i64: 16, 128>}, {transform_indices = @transform_2, window_bounds = array<i64: 1, 3, 8, 128>}]} {
    %c0_i32 = arith.constant 0 : i32
    %0 = arith.cmpi eq, %arg1, %c0_i32 : i32
    %1 = arith.extui %0 : i1 to i32
    %c0_i32_0 = arith.constant 0 : i32
    %2 = arith.cmpi ne, %1, %c0_i32_0 : i32
    scf.if %2 {
      %cst_29 = arith.constant 0.000000e+00 : f32
      %35 = vector.broadcast %cst_29 : f32 to vector<1x3x8x128xf32>
      %c0_30 = arith.constant 0 : index
      %c0_31 = arith.constant 0 : index
      %c0_32 = arith.constant 0 : index
      %c0_33 = arith.constant 0 : index
      %36 = vector.load %arg4[%c0_30, %c0_31, %c0_32, %c0_33] : memref<1x3x8x128xf32, #tpu.memory_space<vmem>>, vector<1x3x8x128xf32>
      tpu.vector_store %arg4[%c0_30, %c0_31, %c0_32, %c0_33], %35 {strides = array<i32>} : memref<1x3x8x128xf32, #tpu.memory_space<vmem>>, vector<1x3x8x128xf32>,
    } else {
    }
    %c0 = arith.constant 0 : index
    %c0_1 = arith.constant 0 : index
    %3 = vector.load %arg2[%c0, %c0_1] : memref<16x128xf32, #tpu.memory_space<vmem>>, vector<16x128xf32>
    %c0_2 = arith.constant 0 : index
    %c0_3 = arith.constant 0 : index
    %4 = vector.load %arg3[%c0_2, %c0_3] : memref<16x128xf32, #tpu.memory_space<vmem>>, vector<16x128xf32>
    %5 = arith.negf %3 : vector<16x128xf32>
    %6 = math.exp %5 : vector<16x128xf32>
    %cst = arith.constant 1.000000e+00 : f32
    %7 = vector.broadcast %cst : f32 to vector<16x128xf32>
    %8 = arith.addf %7, %6 : vector<16x128xf32>
    %9 = arith.divf %7, %8 : vector<16x128xf32>
    %c0_4 = arith.constant 0 : index
    %c0_5 = arith.constant 0 : index
    %c0_6 = arith.constant 0 : index
    %c0_7 = arith.constant 0 : index
    %10 = vector.load %arg4[%c0_4, %c0_5, %c0_6, %c0_7] : memref<1x3x8x128xf32, #tpu.memory_space<vmem>>, vector<1x1x8x128xf32>
    %11 = vector.shape_cast %10 : vector<1x1x8x128xf32> to vector<8x128xf32>
    %12 = arith.mulf %9, %4 : vector<16x128xf32>
    %13 = vector.shape_cast %12 : vector<16x128xf32> to vector<2x8x128xf32>
    %cst_8 = arith.constant dense<0.000000e+00> : vector<8x128xf32>
    %14 = vector.multi_reduction <add>, %13, %cst_8 [0] : vector<2x8x128xf32> to vector<8x128xf32>
    %15 = arith.addf %11, %14 : vector<8x128xf32>
    %c0_9 = arith.constant 0 : index
    %c0_10 = arith.constant 0 : index
    %c0_11 = arith.constant 0 : index
    %c0_12 = arith.constant 0 : index
    %16 = vector.load %arg4[%c0_9, %c0_10, %c0_11, %c0_12] : memref<1x3x8x128xf32, #tpu.memory_space<vmem>>, vector<1x1x8x128xf32>
    %17 = vector.shape_cast %16 : vector<1x1x8x128xf32> to vector<8x128xf32>
    %18 = vector.shape_cast %15 : vector<8x128xf32> to vector<1x1x8x128xf32>
    tpu.vector_store %arg4[%c0_9, %c0_10, %c0_11, %c0_12], %18 {strides = array<i32>} : memref<1x3x8x128xf32, #tpu.memory_space<vmem>>, vector<1x1x8x128xf32>,
    %c0_13 = arith.constant 0 : index
    %c1 = arith.constant 1 : index
    %c0_14 = arith.constant 0 : index
    %c0_15 = arith.constant 0 : index
    %19 = vector.load %arg4[%c0_13, %c1, %c0_14, %c0_15] : memref<1x3x8x128xf32, #tpu.memory_space<vmem>>, vector<1x1x8x128xf32>
    %20 = vector.shape_cast %19 : vector<1x1x8x128xf32> to vector<8x128xf32>
    %21 = vector.shape_cast %9 : vector<16x128xf32> to vector<2x8x128xf32>
    %cst_16 = arith.constant dense<0.000000e+00> : vector<8x128xf32>
    %22 = vector.multi_reduction <add>, %21, %cst_16 [0] : vector<2x8x128xf32> to vector<8x128xf32>
    %23 = arith.addf %20, %22 : vector<8x128xf32>
    %c0_17 = arith.constant 0 : index
    %c1_18 = arith.constant 1 : index
    %c0_19 = arith.constant 0 : index
    %c0_20 = arith.constant 0 : index
    %24 = vector.load %arg4[%c0_17, %c1_18, %c0_19, %c0_20] : memref<1x3x8x128xf32, #tpu.memory_space<vmem>>, vector<1x1x8x128xf32>
    %25 = vector.shape_cast %24 : vector<1x1x8x128xf32> to vector<8x128xf32>
    %26 = vector.shape_cast %23 : vector<8x128xf32> to vector<1x1x8x128xf32>
    tpu.vector_store %arg4[%c0_17, %c1_18, %c0_19, %c0_20], %26 {strides = array<i32>} : memref<1x3x8x128xf32, #tpu.memory_space<vmem>>, vector<1x1x8x128xf32>,
    %c0_21 = arith.constant 0 : index
    %c2 = arith.constant 2 : index
    %c0_22 = arith.constant 0 : index
    %c0_23 = arith.constant 0 : index
    %27 = vector.load %arg4[%c0_21, %c2, %c0_22, %c0_23] : memref<1x3x8x128xf32, #tpu.memory_space<vmem>>, vector<1x1x8x128xf32>
    %28 = vector.shape_cast %27 : vector<1x1x8x128xf32> to vector<8x128xf32>
    %29 = vector.shape_cast %4 : vector<16x128xf32> to vector<2x8x128xf32>
    %cst_24 = arith.constant dense<0.000000e+00> : vector<8x128xf32>
    %30 = vector.multi_reduction <add>, %29, %cst_24 [0] : vector<2x8x128xf32> to vector<8x128xf32>
    %31 = arith.addf %28, %30 : vector<8x128xf32>
    %c0_25 = arith.constant 0 : index
    %c2_26 = arith.constant 2 : index
    %c0_27 = arith.constant 0 : index
    %c0_28 = arith.constant 0 : index
    %32 = vector.load %arg4[%c0_25, %c2_26, %c0_27, %c0_28] : memref<1x3x8x128xf32, #tpu.memory_space<vmem>>, vector<1x1x8x128xf32>
    %33 = vector.shape_cast %32 : vector<1x1x8x128xf32> to vector<8x128xf32>
    %34 = vector.shape_cast %31 : vector<8x128xf32> to vector<1x1x8x128xf32>
    tpu.vector_store %arg4[%c0_25, %c2_26, %c0_27, %c0_28], %34 {strides = array<i32>} : memref<1x3x8x128xf32, #tpu.memory_space<vmem>>, vector<1x1x8x128xf32>,
    return
  }
  func.func @transform_0(%arg0: i32, %arg1: i32) -> (i32, i32) {
    %c1_i32 = arith.constant 1 : i32
    %0 = arith.muli %arg0, %c1_i32 : i32
    %1 = arith.addi %0, %arg1 : i32
    %c0_i32 = arith.constant 0 : i32
    %2 = arith.minsi %1, %c0_i32 : i32
    %c0_i32_0 = arith.constant 0 : i32
    %c0_i32_1 = arith.constant 0 : i32
    return %2, %c0_i32_0 : i32, i32
  }
  func.func @transform_1(%arg0: i32, %arg1: i32) -> (i32, i32) {
    %c1_i32 = arith.constant 1 : i32
    %0 = arith.muli %arg0, %c1_i32 : i32
    %1 = arith.addi %0, %arg1 : i32
    %c0_i32 = arith.constant 0 : i32
    %2 = arith.minsi %1, %c0_i32 : i32
    %c0_i32_0 = arith.constant 0 : i32
    %c0_i32_1 = arith.constant 0 : i32
    return %2, %c0_i32_0 : i32, i32
  }
  func.func @transform_2(%arg0: i32, %arg1: i32) -> (i32, i32, i32, i32) {
    %c0_i32 = arith.constant 0 : i32
    %c0_i32_0 = arith.constant 0 : i32
    %c0_i32_1 = arith.constant 0 : i32
    %c0_i32_2 = arith.constant 0 : i32
    return %arg0, %c0_i32, %c0_i32_0, %c0_i32_1 : i32, i32, i32, i32
  }
}

</mosaic_0001>

<llo_original>
// kernel: tpu_custom_call.1
$region0: #{tpu_custom_call.1}
  #allocation0 [shape = 'u32[]', space=smem, size = 0x4, offset = 0x4, fixed_abs, tag = 'smem constant byte address 0x4 - core index']
  #allocation1 [shape = 'u32[144,128]{1,0:T(1,128)}', space=vmem, size = 0x12000, scoped, tag = 'internal scratch']
  %s0 = inlined_call_operand.hbm [shape: f32[16,128], index: 0, kind: input, shape index: {}]
  %s1 = inlined_call_operand.hbm [shape: f32[16,128], index: 1, kind: input, shape index: {}]
  %s2 = inlined_call_operand.hbm [shape: f32[1,3,8,128], index: 2, kind: output, shape index: {}]
  %s3 = sld [smem:[#allocation0]]
  $region30: #{tpu_custom_call.1} parent=0
    _
  %s5 = ssub.s32 1, %s3
  %s6 = scalar_select 0, %s5, %s3
  $region1: #{tpu_custom_call.1} parent=0
    #allocation2 [shape = 'u8[8192]{0}', space=vmem, size = 0x2000, scoped, tag = 'input window, operand 0, single buffered']
    #allocation3 [shape = 's32[1]{0}', space=sflag, size = 0x4, scoped, tag = 'scoped memory for tpu_custom_call.1']
    #allocation4 [shape = 's32[1]{0}', space=sflag, size = 0x4, scoped, tag = 'scoped memory for tpu_custom_call.1']
    #allocation5 [shape = 'u8[8192]{0}', space=vmem, size = 0x2000, scoped, tag = 'input window, operand 1, single buffered']
    #allocation6 [shape = 's32[1]{0}', space=sflag, size = 0x4, scoped, tag = 'scoped memory for tpu_custom_call.1']
    #allocation7 [shape = 'u8[12288]{0}', space=vmem, size = 0x3000, scoped, tag = 'output window, operand 0, single buffered']
    %7 = vsyncpa [#allocation3], 0
    %8 = vsyncpa [#allocation6], 0
    %9 = vsyncpa [#allocation4], 0
    // Predicated region
    $region2: #{tpu_custom_call.1} parent=1 // pred_check
      _
    $region3: #{tpu_custom_call.1} parent=1 // pred_check_branch
      %11 = sbr.rel (0) target = $region5
    $region4: #{tpu_custom_call.1} parent=1 // pred_region
      %s12 = sadd.s32 0, 0
      %p13 = scmp.lt.s32.totalorder %s12, 0
      %s14 = scalar_select %p13, %s12, 0
      %s15 = smul.u32 2, %s14
      %s17 = ssub.s32 256, 256
      %18 = vsyncadd [#allocation3], %s17
      %s19 = smul.addr %s15, 128
      %s20 = scalar_lea.hbm %s0, %s19
      %s21 = sshll.u32 [#allocation2], 4
      %s22 = int_to_ptr.vmem [resolvable:$true] %s21
      %27 = dma.hbm_to_vmem [thread:$0]  %s20, 256, %s22, [#allocation3], 128, 128, 8
    $region5: #{tpu_custom_call.1} parent=1 // pred_fallthru
      _
    // Predicated region
    $region6: #{tpu_custom_call.1} parent=1 // pred_check
      _
    $region7: #{tpu_custom_call.1} parent=1 // pred_check_branch
      %29 = sbr.rel (0) target = $region9
    $region8: #{tpu_custom_call.1} parent=1 // pred_region
      %s30 = sadd.s32 0, 0
      %p31 = scmp.lt.s32.totalorder %s30, 0
      %s32 = scalar_select %p31, %s30, 0
      %s33 = smul.u32 2, %s32
      %s35 = ssub.s32 256, 256
      %36 = vsyncadd [#allocation6], %s35
      %s37 = smul.addr %s33, 128
      %s38 = scalar_lea.hbm %s1, %s37
      %s39 = sshll.u32 [#allocation5], 4
      %s40 = int_to_ptr.vmem [resolvable:$true] %s39
      %45 = dma.hbm_to_vmem [thread:$0]  %s38, 256, %s40, [#allocation6], 128, 128, 8
    $region9: #{tpu_custom_call.1} parent=1 // pred_fallthru
      _
    // Predicated region
    $region10: #{tpu_custom_call.1} parent=1 // pred_check
      _
    $region11: #{tpu_custom_call.1} parent=1 // pred_check_branch
      %47 = sbr.rel (0) target = $region13
    $region12: #{tpu_custom_call.1} parent=1 // pred_region
      %48 = dma.done [#allocation3], 256
    $region13: #{tpu_custom_call.1} parent=1 // pred_fallthru
      _
    // Predicated region
    $region14: #{tpu_custom_call.1} parent=1 // pred_check
      _
    $region15: #{tpu_custom_call.1} parent=1 // pred_check_branch
      %50 = sbr.rel (0) target = $region17
    $region16: #{tpu_custom_call.1} parent=1 // pred_region
      %51 = dma.done [#allocation6], 256
    $region17: #{tpu_custom_call.1} parent=1 // pred_fallthru
      _
    %s52 = sadd.s32 0, 0
    %p53 = scmp.lt.s32.totalorder %s52, 0
    %s54 = scalar_select %p53, %s52, 0
    %s55 = smul.u32 2, %s54
    %s56 = sadd.s32 0, 0
    %p57 = scmp.lt.s32.totalorder %s56, 0
    %s58 = scalar_select %p57, %s56, 0
    %s59 = smul.u32 2, %s58
    %p60 = scmp.eq.s32.totalorder 0, 0
    // Predicated region
    $region18: #{tpu_custom_call.1} parent=1 // pred_check
      %p61 = pneg %p60
    $region19: #{tpu_custom_call.1} parent=1 // pred_check_branch
      %63 = sbr.rel (%p61) target = $region21
    $region20: #{tpu_custom_call.1} parent=1 // pred_region
      %64 = vst [vmem:[#allocation7] sm:$0xff] 0.0
      %65 = vst [vmem:[#allocation7 + $0x8] sm:$0xff] 0.0
      %66 = vst [vmem:[#allocation7 + $0x10] sm:$0xff] 0.0
    $region21: #{tpu_custom_call.1} parent=1 // pred_fallthru
      _
    %v67 = vld [vmem:[#allocation2] sm:$0xff]
    %v68 = vld [vmem:[#allocation2 + $0x8] sm:$0xff]
    %v69 = vld [vmem:[#allocation5] sm:$0xff]
    %v70 = vld [vmem:[#allocation5 + $0x8] sm:$0xff]
    %v71 = vxor.u32 %v67, 2147483648
    %v72 = vxor.u32 %v68, 2147483648
    %v73 = vmul.f32 %v71, 1.442695
    %v74 = vpow.pop %v73
    %v75 = vmul.f32 %v72, 1.442695
    %v76 = vpow.pop %v75
    %v77 = vadd.f32 %v74, 1.0
    %v78 = vadd.f32 %v76, 1.0
    %v79 = vrcp.pop %v77
    %v80 = vmul.f32 1.0, %v79
    %v81 = vrcp.pop %v78
    %v82 = vmul.f32 1.0, %v81
    %v83 = vld [vmem:[#allocation7] sm:$0xff]
    %v84 = vmul.f32 %v80, %v69
    %v85 = vmul.f32 %v82, %v70
    %v86 = vadd.f32 %v84, %v85
    %v87 = vadd.f32 %v83, %v86
    %88 = vst [vmem:[#allocation7] sm:$0xff] %v87
    %s89 = scalar_lea.vmem [#allocation7], 8
    %v90 = vld [vmem:[%s89] sm:$0xff]
    %v91 = vadd.f32 %v80, %v82
    %v92 = vadd.f32 %v90, %v91
    %93 = vst [vmem:[%s89] sm:$0xff] %v92
    %s94 = scalar_lea.vmem [#allocation7], 16
    %v95 = vld [vmem:[%s94] sm:$0xff]
    %v96 = vadd.f32 %v69, %v70
    %v97 = vadd.f32 %v95, %v96
    %98 = vst [vmem:[%s94] sm:$0xff] %v97
    // Predicated region
    $region22: #{tpu_custom_call.1} parent=1 // pred_check
      _
    $region23: #{tpu_custom_call.1} parent=1 // pred_check_branch
      %100 = sbr.rel (0) target = $region25
    $region24: #{tpu_custom_call.1} parent=1 // pred_region
      %s102 = ssub.s32 384, 384
      %103 = vsyncadd [#allocation4], %s102
      %s104 = sshll.u32 [#allocation7], 4
      %s105 = int_to_ptr.vmem [resolvable:$true] %s104
      %110 = dma.vmem_to_hbm [thread:$0]  %s105, 384, %s2, [#allocation4], 128, 128, 8
    $region25: #{tpu_custom_call.1} parent=1 // pred_fallthru
      _
    // Predicated region
    $region26: #{tpu_custom_call.1} parent=1 // pred_check
      _
    $region27: #{tpu_custom_call.1} parent=1 // pred_check_branch
      %112 = sbr.rel (0) target = $region29
    $region28: #{tpu_custom_call.1} parent=1 // pred_region
      %113 = dma.done [#allocation4], 384
    $region29: #{tpu_custom_call.1} parent=1 // pred_fallthru
      _
    %114 = vsyncpa [#allocation3], 1
    %115 = vsyncpa [#allocation6], 1
    %116 = vsyncpa [#allocation4], 1

</llo_original>
